<compile_context>
chip_gen: v5e
topology: v5e:2x2
jax: 0.10.0
libtpu: 0.0.40
codegen_flags: <defaults>
</compile_context>

<pallas_src>
import functools

import jax
import jax.numpy as jnp
from jax import lax
from jax.experimental import pallas as pl
from jax.experimental.pallas import tpu as pltpu


def _embed_onehot_kernel(ids_ref, emb_t_ref, out_ref):
    """One grid step gathers one tile of flattened tokens via one-hot @ MXU.

    ids_ref   : VMEM (1, tile)  int32 -- token ids for this tile (lanes = tokens)
    emb_t_ref : VMEM (E, C)     f32   -- transposed embedding table (grid-invariant)
    out_ref   : VMEM (E, tile)  f32   -- output block, tokens on the 128-lane axis
    """
    C = emb_t_ref.shape[1]
    tile = out_ref.shape[1]

    # one_hot[c, t] = (ids[t] == c); built on the VPU, consumed by the MXU.
    class_iota = lax.broadcasted_iota(jnp.int32, (C, tile), 0)
    one_hot = (class_iota == ids_ref[...]).astype(emb_t_ref.dtype)

    # (E, C) @ (C, tile) -> (E, tile); exact gather (one 1.0 per column).
    out_ref[...] = jnp.dot(
        emb_t_ref[...], one_hot,
        preferred_element_type=jnp.float32).astype(out_ref.dtype)


def _round_up(x, m):
    return ((x + m - 1) // m) * m


@functools.partial(jax.jit, static_argnames=("max_token_tile",))
def produce_model_forward(ids, emb_table, *, max_token_tile=512):
    """ids: (B, S) int; emb_table: (C, E) float32 -> (B, E, S) float32."""
    B, S = ids.shape
    C, E = emb_table.shape
    N = B * S

    # Tokens sit on the 128-lane axis -> tile must be a multiple of 128 for
    # unmasked, lane-dense stores.  Use a single grid step unless each tile
    # carries real work (>= max_token_tile tokens); on single-TC v5e/v6e extra
    # steps are pure per-step overhead.
    tile = min(max_token_tile, _round_up(N, 128))
    num_tiles = pl.cdiv(N, tile)
    n_pad = num_tiles * tile

    # Clamp once in the wrapper (documented deviation from torch's raise).
    ids_flat = jnp.clip(ids.reshape(-1).astype(jnp.int32), 0, C - 1)
    if n_pad != N:
        ids_flat = jnp.pad(ids_flat, (0, n_pad - N))
    ids_row = ids_flat.reshape(1, n_pad)

    emb_t = emb_table.T  # (E, C): output rows = embedding dims

    cost = pl.CostEstimate(
        flops=2 * E * C * n_pad,
        transcendentals=0,
        bytes_accessed=int(4 * (E * C + n_pad + E * n_pad)),
    )

    gathered = pl.pallas_call(
        _embed_onehot_kernel,
        out_shape=jax.ShapeDtypeStruct((E, n_pad), emb_table.dtype),
        grid=(num_tiles,),
        in_specs=[
            # Per-tile ids block (no whole-array scalar prefetch).
            pl.BlockSpec((1, tile), lambda i: (0, i)),
            # Full transposed table; grid-invariant index_map -> DMA'd once
            # and kept resident across steps.
            pl.BlockSpec((E, C), lambda i: (0, 0)),
        ],
        out_specs=pl.BlockSpec((E, tile), lambda i: (0, i)),
        compiler_params=pltpu.CompilerParams(
            dimension_semantics=("parallel",)),
        cost_estimate=cost,
    )(ids_row, emb_t)

    # (E, N) -> (B, E, S).  The token axis was flattened as (B, S); the slice
    # is a no-op whenever N is already a multiple of the tile.
    return gathered[:, :N].reshape(E, B, S).transpose(1, 0, 2)


if __name__ == "__main__":
    # Small shapes consistent with the module's forward.
    char_dim = 64        # vocabulary size
    embedding_size = 32  # the module's global `embedding_size`
    B, S = 2, 8          # batch, sequence length

    key = jax.random.PRNGKey(0)
    k_ids, k_emb = jax.random.split(key)

    ids = jax.random.randint(k_ids, (B, S), 0, char_dim, dtype=jnp.int32)
    emb_table = jax.random.normal(
        k_emb, (char_dim, embedding_size), dtype=jnp.float32)

    out = jax.block_until_ready(produce_model_forward(ids, emb_table))

    # Pure-JAX reference: embedding lookup + permute(0, 2, 1).
    ref = jnp.transpose(jnp.take(emb_table, ids, axis=0), (0, 2, 1))

    assert out.shape == (B, embedding_size, S), out.shape
    assert jnp.allclose(out, ref, atol=1e-6, rtol=1e-6), "mismatch vs reference"
    print("KERNEL_OK")
</pallas_src>

<mosaic_0001>
module attributes {stable_mosaic.version = 11 : i64} {
  func.func @_embed_onehot_kernel(%arg0: i32, %arg1: memref<1x128xi32, #tpu.memory_space<vmem>>, %arg2: memref<32x64xf32, #tpu.memory_space<vmem>>, %arg3: memref<32x128xf32, #tpu.memory_space<vmem>>) attributes {dimension_semantics = [#tpu.dimension_semantics<parallel>], iteration_bounds = array<i64: 1>, scalar_prefetch = 0 : i64, scratch_operands = 0 : i64, tpu.core_type = #tpu.core_type<tc>, window_params = [{transform_indices = @transform_0, window_bounds = array<i64: 1, 128>}, {pipeline_mode = #tpu.pipeline_mode<synchronous>, transform_indices = @transform_1, window_bounds = array<i64: 32, 64>}, {transform_indices = @transform_2, window_bounds = array<i64: 32, 128>}]} {
    %0 = tpu.iota {dimensions = array<i32: 0>} : vector<64x128xi32>
    %c0 = arith.constant 0 : index
    %c0_0 = arith.constant 0 : index
    %1 = vector.load %arg1[%c0, %c0_0] : memref<1x128xi32, #tpu.memory_space<vmem>>, vector<1x128xi32>
    %2 = vector.broadcast %1 : vector<1x128xi32> to vector<64x128xi32>
    %3 = arith.cmpi eq, %0, %2 : vector<64x128xi32>
    %4 = arith.extui %3 : vector<64x128xi1> to vector<64x128xi32>
    %5 = arith.sitofp %4 : vector<64x128xi32> to vector<64x128xf32>
    %c0_1 = arith.constant 0 : index
    %c0_2 = arith.constant 0 : index
    %6 = vector.load %arg2[%c0_1, %c0_2] : memref<32x64xf32, #tpu.memory_space<vmem>>, vector<32x64xf32>
    %cst = arith.constant dense<0.000000e+00> : vector<32x128xf32>
    %7 = tpu.matmul %6, %5, %cst {dimension_numbers = #tpu.dot_dimension_numbers<[1], [0], [0], [1], [0, 0, 1, 1], [], []>} : vector<32x64xf32>, vector<64x128xf32>, vector<32x128xf32> -> vector<32x128xf32>
    %c0_3 = arith.constant 0 : index
    %c0_4 = arith.constant 0 : index
    %8 = vector.load %arg3[%c0_3, %c0_4] : memref<32x128xf32, #tpu.memory_space<vmem>>, vector<32x128xf32>
    tpu.vector_store %arg3[%c0_3, %c0_4], %7 {strides = array<i32>} : memref<32x128xf32, #tpu.memory_space<vmem>>, vector<32x128xf32>,
    return
  }
  func.func @transform_0(%arg0: i32) -> (i32, i32) {
    %c0_i32 = arith.constant 0 : i32
    %c0_i32_0 = arith.constant 0 : i32
    return %c0_i32, %arg0 : i32, i32
  }
  func.func @transform_1(%arg0: i32) -> (i32, i32) {
    %c0_i32 = arith.constant 0 : i32
    %c0_i32_0 = arith.constant 0 : i32
    %c0_i32_1 = arith.constant 0 : i32
    return %c0_i32, %c0_i32_0 : i32, i32
  }
  func.func @transform_2(%arg0: i32) -> (i32, i32) {
    %c0_i32 = arith.constant 0 : i32
    %c0_i32_0 = arith.constant 0 : i32
    return %c0_i32, %arg0 : i32, i32
  }
}

</mosaic_0001>

<llo_original>
// kernel: produce_model_forward.1
$region0: #{produce_model_forward.1}
  #allocation0 [shape = 'u32[]', space=smem, size = 0x4, offset = 0x4, fixed_abs, tag = 'smem constant byte address 0x4 - core index']
  #allocation1 [shape = 'u32[72,128]{1,0:T(1,128)}', space=vmem, size = 0x9000, scoped, tag = 'internal scratch']
  %s0 = inlined_call_operand.vmem [shape: s32[1,128], index: 0, kind: input, shape index: {}]
  %s1 = inlined_call_operand.hbm [shape: f32[32,64], index: 1, kind: input, shape index: {}]
  %s2 = inlined_call_operand.vmem [shape: f32[32,128], index: 2, kind: output, shape index: {}]
  %s3 = sld [smem:[#allocation0]]
  $region22: #{produce_model_forward.1} parent=0
    _
  %s5 = ssub.s32 1, %s3
  %s6 = scalar_select 0, %s5, %s3
  $region1: #{produce_model_forward.1} parent=0
    #allocation2 [shape = 'u8[16384]{0}', space=vmem, size = 0x4000, scoped, tag = 'input window, operand 1, single buffered']
    #allocation3 [shape = 's32[1]{0}', space=sflag, size = 0x4, scoped, tag = 'scoped memory for produce_model_forward.1']
    %7 = vsyncpa [#allocation3], 0
    // Predicated region
    $region2: #{produce_model_forward.1} parent=1 // pred_check
      _
    $region3: #{produce_model_forward.1} parent=1 // pred_check_branch
      %9 = sbr.rel (0) target = $region5
    $region4: #{produce_model_forward.1} parent=1 // pred_region
      _
    $region5: #{produce_model_forward.1} parent=1 // pred_fallthru
      _
    // Predicated region
    $region6: #{produce_model_forward.1} parent=1 // pred_check
      _
    $region7: #{produce_model_forward.1} parent=1 // pred_check_branch
      %11 = sbr.rel (0) target = $region9
    $region8: #{produce_model_forward.1} parent=1 // pred_region
      %13 = vsyncadd [#allocation3], 0
      %s14 = sshll.u32 %s1, 4
      %s15 = int_to_ptr.hbm [resolvable:$true] %s14
      %s16 = sshll.u32 [#allocation2], 4
      %s17 = int_to_ptr.vmem [resolvable:$true] %s16
      %22 = dma.hbm_to_vmem [thread:$0]  %s15, 512, %s17, [#allocation3], 128, 128, 8
    $region9: #{produce_model_forward.1} parent=1 // pred_fallthru
      _
    // Predicated region
    $region10: #{produce_model_forward.1} parent=1 // pred_check
      _
    $region11: #{produce_model_forward.1} parent=1 // pred_check_branch
      %24 = sbr.rel (0) target = $region13
    $region12: #{produce_model_forward.1} parent=1 // pred_region
      %26 = dma.done [#allocation3], 512
    $region13: #{produce_model_forward.1} parent=1 // pred_fallthru
      _
    %v27 = vlaneseq
    %v28 = vshrl.u32 %v27, 7
    %v29 = vadd.s32 %v28, 8
    %v30 = vadd.s32 %v28, 16
    %v31 = vadd.s32 %v28, 24
    %v32 = vadd.s32 %v28, 32
    %v33 = vadd.s32 %v28, 40
    %v34 = vadd.s32 %v28, 48
    %v35 = vadd.s32 %v28, 56
    %v36 = vld [vmem:[%s0] sm:$0x1]
    %v37 = vperm.slane %v36, 0
    %vm38 = vcmp.eq.s32.totalorder %v28, %v37
    %vm39 = vcmp.eq.s32.totalorder %v29, %v37
    %vm40 = vcmp.eq.s32.totalorder %v30, %v37
    %vm41 = vcmp.eq.s32.totalorder %v31, %v37
    %vm42 = vcmp.eq.s32.totalorder %v32, %v37
    %vm43 = vcmp.eq.s32.totalorder %v33, %v37
    %vm44 = vcmp.eq.s32.totalorder %v34, %v37
    %vm45 = vcmp.eq.s32.totalorder %v35, %v37
    %v46 = vsel %vm38, 1, 0
    %v47 = vsel %vm39, 1, 0
    %v48 = vsel %vm40, 1, 0
    %v49 = vsel %vm41, 1, 0
    %v50 = vsel %vm42, 1, 0
    %v51 = vsel %vm43, 1, 0
    %v52 = vsel %vm44, 1, 0
    %v53 = vsel %vm45, 1, 0
    %v54 = vcvt.s32.f32 %v46
    %v55 = vcvt.s32.f32 %v47
    %v56 = vcvt.s32.f32 %v48
    %v57 = vcvt.s32.f32 %v49
    %v58 = vcvt.s32.f32 %v50
    %v59 = vcvt.s32.f32 %v51
    %v60 = vcvt.s32.f32 %v52
    %v61 = vcvt.s32.f32 %v53
    %v62 = vld [vmem:[#allocation2] sm:$0xff]
    %v63 = vld [vmem:[#allocation2 + $0x8] sm:$0xff]
    %v64 = vld [vmem:[#allocation2 + $0x10] sm:$0xff]
    %v65 = vld [vmem:[#allocation2 + $0x18] sm:$0xff]
    %vm66 = vcmask 523264
    %v68 = vsel %vm66, %v62, 0
    %v71 = vsel %vm66, %v63, 0
    %v74 = vsel %vm66, %v64, 0
    %v77 = vsel %vm66, %v65, 0
    %79 = vmatpush.msra.mxu0 0.0
    %80 = vmatpush.msra.mxu0 0.0
    %81 = vmatpush.msra.mxu0 0.0
    %82 = vmatpush.msra.mxu0 0.0
    %83 = vmatpush.msra.mxu0 0.0
    %84 = vmatpush.msra.mxu0 0.0
    %85 = vmatpush.msra.mxu0 0.0
    %86 = vmatpush.msra.mxu0 0.0
    %87 = vmatpush.msra.mxu0 %v61
    %88 = vmatpush.msra.mxu0 %v60
    %89 = vmatpush.msra.mxu0 %v59
    %90 = vmatpush.msra.mxu0 %v58
    %91 = vmatpush.msra.mxu0 %v57
    %92 = vmatpush.msra.mxu0 %v56
    %93 = vmatpush.msra.mxu0 %v55
    %94 = vmatpush.msra.mxu0 %v54
    %95 = vmatmul.f32.gmra.mxu0 %v68
    %v96 = vpop.f32.mrf.mxu0
    %v97 = vadd.f32 0.0, %v96
    %98 = vmatmul.f32.gmra.mxu0 %v71
    %v99 = vpop.f32.mrf.mxu0
    %v100 = vadd.f32 0.0, %v99
    %101 = vmatmul.f32.gmra.mxu0 %v74
    %v102 = vpop.f32.mrf.mxu0
    %v103 = vadd.f32 0.0, %v102
    %104 = vmatmul.f32.gmra.mxu0 %v77
    %v105 = vpop.f32.mrf.mxu0
    %v106 = vadd.f32 0.0, %v105
    %107 = vdwg.mxu0
    %108 = vst [vmem:[%s2] sm:$0xff] %v97
    %109 = vst [vmem:[%s2 + $0x8] sm:$0xff] %v100
    %110 = vst [vmem:[%s2 + $0x10] sm:$0xff] %v103
    %111 = vst [vmem:[%s2 + $0x18] sm:$0xff] %v106
    // Predicated region
    $region14: #{produce_model_forward.1} parent=1 // pred_check
      _
    $region15: #{produce_model_forward.1} parent=1 // pred_check_branch
      %113 = sbr.rel (0) target = $region17
    $region16: #{produce_model_forward.1} parent=1 // pred_region
      _
    $region17: #{produce_model_forward.1} parent=1 // pred_fallthru
      _
    // Predicated region
    $region18: #{produce_model_forward.1} parent=1 // pred_check
      _
    $region19: #{produce_model_forward.1} parent=1 // pred_check_branch
      %115 = sbr.rel (0) target = $region21
    $region20: #{produce_model_forward.1} parent=1 // pred_region
      _
    $region21: #{produce_model_forward.1} parent=1 // pred_fallthru
      _
    %116 = vsyncpa [#allocation3], 1

</llo_original>
